<compile_context>
chip_gen: v7x
topology: tpu7x:2x2x1
jax: 0.10.0
libtpu: 0.0.40
codegen_flags: <defaults>
</compile_context>

<pallas_src>
import math

import numpy as np

import jax
import jax.numpy as jnp
from jax.experimental import pallas as pl
from jax.experimental.pallas import tpu as pltpu


def _round_up(x, m):
    return (x + m - 1) // m * m


# ----------------------------------------------------------------------------- 
# Kernels
# -----------------------------------------------------------------------------

def _mlp_kernel_fused(x_ref, w_ref, b_ref, o_ref):
    """Single-K-block case: matmul + bias + LeakyReLU in one shot, no scratch."""
    y = jnp.dot(x_ref[...], w_ref[...], preferred_element_type=jnp.float32)
    y = y + b_ref[...]
    # LeakyReLU(negative_slope=0.25); max form valid because 0 < 0.25 < 1.
    o_ref[...] = jnp.maximum(y, 0.25 * y).astype(o_ref.dtype)


def _mlp_kernel_acc(x_ref, w_ref, b_ref, o_ref, acc_ref):
    """Multi-K-block case: grid = (j_n, i_m, k), K innermost, f32 accumulator."""
    k = pl.program_id(2)
    prod = jnp.dot(x_ref[...], w_ref[...], preferred_element_type=jnp.float32)

    @pl.when(k == 0)
    def _():
        acc_ref[...] = prod          # direct assign: no zero-fill pass

    @pl.when(k > 0)
    def _():
        acc_ref[...] += prod

    @pl.when(k == pl.num_programs(2) - 1)
    def _():
        y = acc_ref[...] + b_ref[...]
        o_ref[...] = jnp.maximum(y, 0.25 * y).astype(o_ref.dtype)


# -----------------------------------------------------------------------------
# Tiling / VMEM budgeting
# -----------------------------------------------------------------------------

def _vmem_limit_bytes():
    """Scoped-VMEM limit to request; generation-aware with a safe fallback."""
    cap = None
    try:
        info = pltpu.get_tpu_info()
        cap = getattr(info, "vmem_capacity_bytes", None)
    except Exception:
        cap = None
    if not cap:
        cap = 64 * 1024 * 1024               # conservative: v7x per-TC VMEM
    cap = max(32 * 1024 * 1024, min(int(cap), 128 * 1024 * 1024))
    # Leave headroom for compiler-internal scratch; never ask for > 96 MiB.
    return min(int(0.75 * cap), 96 * 1024 * 1024)


def _choose_tiles(M, in_c, out_c, x_isz, w_isz, out_isz, budget):
    # Sublane multiple accounting for sub-32-bit packing (bf16 -> 16).
    sub = max(8, 32 // min(x_isz, out_isz))
    k128 = _round_up(in_c, 128)
    n128 = _round_up(out_c, 128)

    tile_m = min(_round_up(M, sub), 1024)
    tile_n = min(n128, 1024)
    k_cap = 4096 if x_isz <= 2 else 2048     # bf16 tiles are half the bytes
    tile_k = min(k128, k_cap)

    def vmem_bytes(tm, tn, tk):
        nkb = pl.cdiv(in_c, tk)
        buf = 2 * tm * tk * x_isz            # x, double-buffered
        buf += 2 * tk * tn * w_isz           # W, double-buffered
        buf += 2 * tm * tn * out_isz         # out, double-buffered
        buf += 2 * tn * 4                    # bias
        if nkb > 1:
            buf += tm * tn * 4               # f32 accumulator scratch
        return buf

    # Shrink until the tiles fit the scoped-VMEM budget: K first, then M, then N.
    while vmem_bytes(tile_m, tile_n, tile_k) > budget:
        if tile_k > 512:
            tile_k = _round_up(tile_k // 2, 128)
        elif tile_m > 256:
            tile_m = _round_up(tile_m // 2, sub)
        elif tile_n > 256:
            tile_n = _round_up(tile_n // 2, 128)
        elif tile_k > 128:
            tile_k = _round_up(tile_k // 2, 128)
        elif tile_m > sub:
            tile_m = _round_up(tile_m // 2, sub)
        else:
            break

    # v7x has 2 TensorCores sharded over "parallel" grid axes: make sure there
    # are >= 2 parallel output blocks when the problem allows it (cheap no-op
    # overhead on single-TC chips).
    if pl.cdiv(M, tile_m) * pl.cdiv(out_c, tile_n) < 2:
        half_m = _round_up(max(sub, tile_m // 2), sub)
        half_n = _round_up(max(128, tile_n // 2), 128)
        if half_m < tile_m and M > half_m:
            tile_m = half_m
        elif half_n < tile_n and out_c > half_n:
            tile_n = half_n

    return tile_m, tile_n, tile_k


# -----------------------------------------------------------------------------
# Forward
# -----------------------------------------------------------------------------

def mlp_forward(x, w, b, *, compute_dtype=jnp.bfloat16,
                tile_m=None, tile_n=None, tile_k=None):
    """LeakyReLU_{0.25}(x @ w + b).

    x: (..., in_c); w: (in_c, out_c); b: (out_c,).
    compute_dtype: dtype of the matmul operands (default bf16 -> MXU-native on
    v5e/v6e/v7x; accumulation and epilogue stay f32). Pass jnp.float32 (or None
    to use x.dtype) for a bit-strict path.
    tile_m/tile_n/tile_k: optional overrides (testing / tuning).
    """
    orig_shape = x.shape
    in_c = orig_shape[-1]
    out_c = w.shape[1]
    out_dtype = x.dtype

    x2 = x.reshape(-1, in_c)
    M = x2.shape[0]

    if compute_dtype is None:
        compute_dtype = x2.dtype
    if x2.dtype != compute_dtype:
        x2 = x2.astype(compute_dtype)
    if w.dtype != compute_dtype:
        # No-op when weights were pre-cast at init time (recommended path).
        w = w.astype(compute_dtype)

    x_isz = np.dtype(compute_dtype).itemsize
    out_isz = np.dtype(out_dtype).itemsize

    vmem_limit = _vmem_limit_bytes()
    tm, tn, tk = _choose_tiles(M, in_c, out_c, x_isz, x_isz, out_isz,
                               budget=int(0.70 * vmem_limit))
    if tile_m is not None:
        tm = tile_m
    if tile_n is not None:
        tn = tile_n
    if tile_k is not None:
        tk = tile_k

    # Zero-pad the reduction axis only (required for correctness). M and N are
    # handled by partial edge blocks whose out-of-range rows/cols never reach HBM.
    K_pad = _round_up(in_c, tk)
    if K_pad != in_c:
        x2 = jnp.pad(x2, ((0, 0), (0, K_pad - in_c)))
        w = jnp.pad(w, ((0, K_pad - in_c), (0, 0)))

    b2 = b.astype(jnp.float32).reshape(1, out_c)

    m_blocks = pl.cdiv(M, tm)
    n_blocks = pl.cdiv(out_c, tn)
    k_blocks = K_pad // tk

    # Weight panel is VMEM-resident across the M sweep when K fits one tile
    # (N-major grid order); otherwise it is re-streamed once per M tile.
    weight_passes = 1 if k_blocks == 1 else m_blocks
    cost = pl.CostEstimate(
        flops=2 * M * in_c * out_c,
        transcendentals=0,
        bytes_accessed=int(x_isz * M * in_c
                           + x_isz * in_c * out_c * weight_passes
                           + 4 * out_c
                           + out_isz * M * out_c),
    )

    if k_blocks == 1:
        out = pl.pallas_call(
            _mlp_kernel_fused,
            out_shape=jax.ShapeDtypeStruct((M, out_c), out_dtype),
            grid_spec=pltpu.PrefetchScalarGridSpec(
                num_scalar_prefetch=0,
                grid=(n_blocks, m_blocks),                      # (j, i), N-major
                in_specs=[
                    pl.BlockSpec((tm, tk), lambda j, i: (i, 0)),   # x tile
                    pl.BlockSpec((tk, tn), lambda j, i: (0, j)),   # W tile (resident per j)
                    pl.BlockSpec((1, tn), lambda j, i: (0, j)),    # bias row
                ],
                out_specs=pl.BlockSpec((tm, tn), lambda j, i: (i, j)),
            ),
            compiler_params=pltpu.CompilerParams(
                dimension_semantics=("parallel", "parallel"),
                vmem_limit_bytes=vmem_limit,
            ),
            cost_estimate=cost,
        )(x2, w, b2)
    else:
        out = pl.pallas_call(
            _mlp_kernel_acc,
            out_shape=jax.ShapeDtypeStruct((M, out_c), out_dtype),
            grid_spec=pltpu.PrefetchScalarGridSpec(
                num_scalar_prefetch=0,
                grid=(n_blocks, m_blocks, k_blocks),            # (j, i, k), K innermost
                in_specs=[
                    pl.BlockSpec((tm, tk), lambda j, i, k: (i, k)),  # x tile
                    pl.BlockSpec((tk, tn), lambda j, i, k: (k, j)),  # W tile
                    pl.BlockSpec((1, tn), lambda j, i, k: (0, j)),   # bias row
                ],
                out_specs=pl.BlockSpec((tm, tn), lambda j, i, k: (i, j)),
                scratch_shapes=[pltpu.VMEM((tm, tn), jnp.float32)],
            ),
            compiler_params=pltpu.CompilerParams(
                dimension_semantics=("parallel", "parallel", "arbitrary"),
                vmem_limit_bytes=vmem_limit,
            ),
            cost_estimate=cost,
        )(x2, w, b2)

    return out.reshape(*orig_shape[:-1], out_c)


# -----------------------------------------------------------------------------
# Parameter init (matches the PyTorch module with init_method='kaiming')
# -----------------------------------------------------------------------------

def init_mlp_params(key, in_c, out_c, *, param_dtype=jnp.bfloat16):
    """kaiming_normal_ (PyTorch default: fan_in, leaky_relu, a=0) for weight of
    shape (out_c, in_c), zero bias. Returns (W^T cast to param_dtype, b in f32).
    Pre-casting to bf16 here avoids a per-forward weight cast/copy."""
    gain = math.sqrt(2.0)              # nonlinearity='leaky_relu', a=0
    std = gain / math.sqrt(in_c)       # fan_in = in_c
    w = jax.random.normal(key, (out_c, in_c), dtype=jnp.float32) * std
    b = jnp.zeros((out_c,), dtype=jnp.float32)
    return w.T.astype(param_dtype), b  # store transposed for x @ W


def mlp_reference(x, w_t, b, compute_dtype=None):
    x = x.astype(jnp.float32)
    w_t = w_t.astype(jnp.float32)
    if compute_dtype is not None:
        x = x.astype(compute_dtype).astype(jnp.float32)
        w_t = w_t.astype(compute_dtype).astype(jnp.float32)
    y = x @ w_t + b
    return jnp.where(y >= 0, y, 0.25 * y)


# -----------------------------------------------------------------------------
# Tests
# -----------------------------------------------------------------------------

if __name__ == "__main__":
    key = jax.random.PRNGKey(0)
    k_w, k_x, k_w2, k_x2, k_w3, k_x3 = jax.random.split(key, 6)

    # Test 1: natural (batch, in_c) usage; strict f32 path (fused kernel).
    batch, in_c, out_c = 8, 32, 32
    w_t, b = init_mlp_params(k_w, in_c, out_c, param_dtype=jnp.float32)
    x = jax.random.normal(k_x, (batch, in_c), dtype=jnp.float32)

    out = jax.block_until_ready(mlp_forward(x, w_t, b, compute_dtype=jnp.float32))
    ref = mlp_reference(x, w_t, b)
    assert out.shape == (batch, out_c)
    assert jnp.allclose(out, ref, atol=1e-5, rtol=1e-5)

    # Test 2: ragged (non-128) shapes + leading dims, default bf16 operands.
    in_c2, out_c2 = 48, 96
    w_t2, b2 = init_mlp_params(k_w2, in_c2, out_c2)          # bf16 weights
    x2 = jax.random.normal(k_x2, (2, 5, in_c2), dtype=jnp.float32)

    out2 = jax.block_until_ready(mlp_forward(x2, w_t2, b2))  # bf16 compute default
    ref2 = mlp_reference(x2.reshape(-1, in_c2), w_t2, b2,
                         compute_dtype=jnp.bfloat16).reshape(2, 5, out_c2)
    assert out2.shape == (2, 5, out_c2)
    assert jnp.allclose(out2, ref2, atol=1e-3, rtol=1e-3)

    # Test 3: forced K split (tile_k=128 over in_c=256) exercises the
    # accumulator kernel (multi-K grid, f32 VMEM scratch, no zero-fill).
    in_c3, out_c3, batch3 = 256, 128, 16
    w_t3, b3 = init_mlp_params(k_w3, in_c3, out_c3, param_dtype=jnp.float32)
    x3 = jax.random.normal(k_x3, (batch3, in_c3), dtype=jnp.float32)

    out3 = jax.block_until_ready(
        mlp_forward(x3, w_t3, b3, compute_dtype=jnp.float32, tile_k=128))
    ref3 = mlp_reference(x3, w_t3, b3)
    assert out3.shape == (batch3, out_c3)
    assert jnp.allclose(out3, ref3, atol=1e-3, rtol=1e-3)

    print("KERNEL_OK")
</pallas_src>

<mosaic_0001>
module attributes {stable_mosaic.version = 11 : i64} {
  func.func @_mlp_kernel_fused(%arg0: i32, %arg1: i32, %arg2: memref<8x128xf32, #tpu.memory_space<vmem>>, %arg3: memref<128x128xf32, #tpu.memory_space<vmem>>, %arg4: memref<1x128xf32, #tpu.memory_space<vmem>>, %arg5: memref<8x128xf32, #tpu.memory_space<vmem>>) attributes {dimension_semantics = [#tpu.dimension_semantics<parallel>, #tpu.dimension_semantics<parallel>], iteration_bounds = array<i64: 1, 1>, scalar_prefetch = 0 : i64, scratch_operands = 0 : i64, tpu.core_type = #tpu.core_type<tc>, window_params = [{transform_indices = @transform_0, window_bounds = array<i64: 8, 128>}, {transform_indices = @transform_1, window_bounds = array<i64: 128, 128>}, {transform_indices = @transform_2, window_bounds = array<i64: 1, 128>}, {transform_indices = @transform_3, window_bounds = array<i64: 8, 128>}]} {
    %c0 = arith.constant 0 : index
    %c0_0 = arith.constant 0 : index
    %0 = vector.load %arg2[%c0, %c0_0] : memref<8x128xf32, #tpu.memory_space<vmem>>, vector<8x128xf32>
    %c0_1 = arith.constant 0 : index
    %c0_2 = arith.constant 0 : index
    %1 = vector.load %arg3[%c0_1, %c0_2] : memref<128x128xf32, #tpu.memory_space<vmem>>, vector<128x128xf32>
    %cst = arith.constant dense<0.000000e+00> : vector<8x128xf32>
    %2 = tpu.matmul %0, %1, %cst {dimension_numbers = #tpu.dot_dimension_numbers<[1], [0], [0], [1], [0, 0, 1, 1], [], []>} : vector<8x128xf32>, vector<128x128xf32>, vector<8x128xf32> -> vector<8x128xf32>
    %c0_3 = arith.constant 0 : index
    %c0_4 = arith.constant 0 : index
    %3 = vector.load %arg4[%c0_3, %c0_4] : memref<1x128xf32, #tpu.memory_space<vmem>>, vector<1x128xf32>
    %4 = vector.broadcast %3 : vector<1x128xf32> to vector<8x128xf32>
    %5 = arith.addf %2, %4 : vector<8x128xf32>
    %cst_5 = arith.constant 2.500000e-01 : f32
    %6 = vector.broadcast %cst_5 : f32 to vector<8x128xf32>
    %7 = arith.mulf %6, %5 : vector<8x128xf32>
    %8 = arith.maximumf %5, %7 : vector<8x128xf32>
    %c0_6 = arith.constant 0 : index
    %c0_7 = arith.constant 0 : index
    %9 = vector.load %arg5[%c0_6, %c0_7] : memref<8x128xf32, #tpu.memory_space<vmem>>, vector<8x128xf32>
    tpu.vector_store %arg5[%c0_6, %c0_7], %8 {strides = array<i32>} : memref<8x128xf32, #tpu.memory_space<vmem>>, vector<8x128xf32>,
    return
  }
  func.func @transform_0(%arg0: i32, %arg1: i32) -> (i32, i32) {
    %c0_i32 = arith.constant 0 : i32
    %c0_i32_0 = arith.constant 0 : i32
    return %arg1, %c0_i32 : i32, i32
  }
  func.func @transform_1(%arg0: i32, %arg1: i32) -> (i32, i32) {
    %c0_i32 = arith.constant 0 : i32
    %c0_i32_0 = arith.constant 0 : i32
    return %c0_i32, %arg0 : i32, i32
  }
  func.func @transform_2(%arg0: i32, %arg1: i32) -> (i32, i32) {
    %c0_i32 = arith.constant 0 : i32
    %c0_i32_0 = arith.constant 0 : i32
    return %c0_i32, %arg0 : i32, i32
  }
  func.func @transform_3(%arg0: i32, %arg1: i32) -> (i32, i32) {
    %c0_i32 = arith.constant 0 : i32
    return %arg1, %arg0 : i32, i32
  }
}

</mosaic_0001>

<llo_original>
// kernel: tpu_custom_call.1
$region0: #{tpu_custom_call.1}
  #allocation0 [shape = 'u32[]', space=smem, size = 0x4, offset = 0x4, fixed_abs, tag = 'smem constant byte address 0x4 - core index']
  #allocation1 [shape = 'u32[144,128]{1,0:T(1,128)}', space=vmem, size = 0x12000, scoped, tag = 'internal scratch']
  %s0 = inlined_call_operand.vmem [shape: f32[8,128], index: 0, kind: input, shape index: {}]
  %s1 = inlined_call_operand.vmem [shape: f32[128,32], index: 1, kind: input, shape index: {}]
  %s2 = inlined_call_operand.vmem [shape: f32[1,32], index: 2, kind: input, shape index: {}]
  %s3 = inlined_call_operand.hbm [shape: f32[8,32], index: 3, kind: output, shape index: {}]
  %s4 = sld [smem:[#allocation0]]
  $region22: #{tpu_custom_call.1} parent=0
    _
  %s6 = ssub.s32 1, %s4
  %s7 = scalar_select 0, %s6, %s4
  $region1: #{tpu_custom_call.1} parent=0
    #allocation2 [shape = 'u8[4096]{0}', space=vmem, size = 0x1000, scoped, tag = 'output window, operand 0, single buffered']
    #allocation3 [shape = 's32[1]{0}', space=sflag, size = 0x4, scoped, tag = 'scoped memory for tpu_custom_call.1']
    %8 = vsyncpa [#allocation3], 0
    // Predicated region
    $region2: #{tpu_custom_call.1} parent=1 // pred_check
      _
    $region3: #{tpu_custom_call.1} parent=1 // pred_check_branch
      %10 = sbr.rel (0) target = $region5
    $region4: #{tpu_custom_call.1} parent=1 // pred_region
      _
    $region5: #{tpu_custom_call.1} parent=1 // pred_fallthru
      _
    // Predicated region
    $region6: #{tpu_custom_call.1} parent=1 // pred_check
      _
    $region7: #{tpu_custom_call.1} parent=1 // pred_check_branch
      %12 = sbr.rel (0) target = $region9
    $region8: #{tpu_custom_call.1} parent=1 // pred_region
      _
    $region9: #{tpu_custom_call.1} parent=1 // pred_fallthru
      _
    // Predicated region
    $region10: #{tpu_custom_call.1} parent=1 // pred_check
      _
    $region11: #{tpu_custom_call.1} parent=1 // pred_check_branch
      %14 = sbr.rel (0) target = $region13
    $region12: #{tpu_custom_call.1} parent=1 // pred_region
      _
    $region13: #{tpu_custom_call.1} parent=1 // pred_fallthru
      _
    %v15 = vld [vmem:[%s0] sm:$0xff]
    %v16 = vld [vmem:[%s1] sm:$0xff]
    %v17 = vld [vmem:[%s1 + $0x8] sm:$0xff]
    %v18 = vld [vmem:[%s1 + $0x10] sm:$0xff]
    %v19 = vld [vmem:[%s1 + $0x18] sm:$0xff]
    %v20 = vld [vmem:[%s1 + $0x20] sm:$0xff]
    %v21 = vld [vmem:[%s1 + $0x28] sm:$0xff]
    %v22 = vld [vmem:[%s1 + $0x30] sm:$0xff]
    %v23 = vld [vmem:[%s1 + $0x38] sm:$0xff]
    %v24 = vld [vmem:[%s1 + $0x40] sm:$0xff]
    %v25 = vld [vmem:[%s1 + $0x48] sm:$0xff]
    %v26 = vld [vmem:[%s1 + $0x50] sm:$0xff]
    %v27 = vld [vmem:[%s1 + $0x58] sm:$0xff]
    %v28 = vld [vmem:[%s1 + $0x60] sm:$0xff]
    %v29 = vld [vmem:[%s1 + $0x68] sm:$0xff]
    %v30 = vld [vmem:[%s1 + $0x70] sm:$0xff]
    %v31 = vld [vmem:[%s1 + $0x78] sm:$0xff]
    %v32 = vld [vmem:[%s2] sm:$0x1]
    %v34 = vlaneseq
    %v35 = vshrl.u32 %v34, 7
    %v36 = vsub.s32 0, %v35
    %v37 = vrot.slane %v32, %v36
    %39 = vmatprep.subr.mxu0 0.0
    %40 = vmatpush1.msra.mxu0 %v16
    %41 = vmatprep.subr.mxu0 0.0
    %42 = vmatpush1.msra.mxu0 %v17
    %43 = vmatprep.subr.mxu0 0.0
    %44 = vmatpush1.msra.mxu0 %v18
    %45 = vmatprep.subr.mxu0 0.0
    %46 = vmatpush1.msra.mxu0 %v19
    %47 = vmatprep.subr.mxu0 0.0
    %48 = vmatpush1.msra.mxu0 %v20
    %49 = vmatprep.subr.mxu0 0.0
    %50 = vmatpush1.msra.mxu0 %v21
    %51 = vmatprep.subr.mxu0 0.0
    %52 = vmatpush1.msra.mxu0 %v22
    %53 = vmatprep.subr.mxu0 0.0
    %54 = vmatpush1.msra.mxu0 %v23
    %55 = vmatprep.subr.mxu0 0.0
    %56 = vmatpush1.msra.mxu0 %v24
    %57 = vmatprep.subr.mxu0 0.0
    %58 = vmatpush1.msra.mxu0 %v25
    %59 = vmatprep.subr.mxu0 0.0
    %60 = vmatpush1.msra.mxu0 %v26
    %61 = vmatprep.subr.mxu0 0.0
    %62 = vmatpush1.msra.mxu0 %v27
    %63 = vmatprep.subr.mxu0 0.0
    %64 = vmatpush1.msra.mxu0 %v28
    %65 = vmatprep.subr.mxu0 0.0
    %66 = vmatpush1.msra.mxu0 %v29
    %67 = vmatprep.subr.mxu0 0.0
    %68 = vmatpush1.msra.mxu0 %v30
    %69 = vmatprep.subr.mxu0 0.0
    %70 = vmatpush1.msra.mxu0 %v31
    %71 = vmatprep.subr.mxu0 0.0
    %72 = vmatpush1.msra.mxu0 0.0
    %73 = vmatprep.subr.mxu0 0.0
    %74 = vmatpush1.msra.mxu0 0.0
    %75 = vmatprep.subr.mxu0 0.0
    %76 = vmatpush1.msra.mxu0 0.0
    %77 = vmatprep.subr.mxu0 0.0
    %78 = vmatpush1.msra.mxu0 0.0
    %79 = vmatprep.subr.mxu0 0.0
    %80 = vmatpush1.msra.mxu0 0.0
    %81 = vmatprep.subr.mxu0 0.0
    %82 = vmatpush1.msra.mxu0 0.0
    %83 = vmatprep.subr.mxu0 0.0
    %84 = vmatpush1.msra.mxu0 0.0
    %85 = vmatprep.subr.mxu0 0.0
    %86 = vmatpush1.msra.mxu0 0.0
    %87 = vmatprep.subr.mxu0 0.0
    %88 = vmatpush1.msra.mxu0 0.0
    %89 = vmatprep.subr.mxu0 0.0
    %90 = vmatpush1.msra.mxu0 0.0
    %91 = vmatprep.subr.mxu0 0.0
    %92 = vmatpush1.msra.mxu0 0.0
    %93 = vmatprep.subr.mxu0 0.0
    %94 = vmatpush1.msra.mxu0 0.0
    %95 = vmatprep.subr.mxu0 0.0
    %96 = vmatpush1.msra.mxu0 0.0
    %97 = vmatprep.subr.mxu0 0.0
    %98 = vmatpush1.msra.mxu0 0.0
    %99 = vmatprep.subr.mxu0 0.0
    %100 = vmatpush1.msra.mxu0 0.0
    %101 = vmatprep.subr.mxu0 0.0
    %102 = vmatpush1.msra.mxu0 0.0
    %103 = vmatprep.mubr.f32.mxu0 0.0
    %104 = vmatmul.mubr.f32.gmra.mrb[0].mxu0 %v15
    %v105 = vpop.f32.mrb[0].mxu0
    %v106 = vadd.f32 %v37, %v105
    %v107 = vpop.f32.mrb[0].mxu0
    %108 = vdwg.mxu0
    %v109 = vmul.f32 %v106, 0.25
    %v110 = vmax.f32 %v106, %v109
    %111 = vst [vmem:[#allocation2] sm:$0xff] %v110
    // Predicated region
    $region14: #{tpu_custom_call.1} parent=1 // pred_check
      _
    $region15: #{tpu_custom_call.1} parent=1 // pred_check_branch
      %113 = sbr.rel (0) target = $region17
    $region16: #{tpu_custom_call.1} parent=1 // pred_region
      %s115 = ssub.s32 128, 128
      %116 = vsyncadd [#allocation3], %s115
      %s118 = sshll.u32 [#allocation2], 4
      %s119 = int_to_ptr.vmem [resolvable:$true] %s118
      %121 = dma.vmem_to_hbm [thread:$0]  %s119, 128, %s3, [#allocation3]
    $region17: #{tpu_custom_call.1} parent=1 // pred_fallthru
      _
    // Predicated region
    $region18: #{tpu_custom_call.1} parent=1 // pred_check
      _
    $region19: #{tpu_custom_call.1} parent=1 // pred_check_branch
      %123 = sbr.rel (0) target = $region21
    $region20: #{tpu_custom_call.1} parent=1 // pred_region
      %124 = dma.done [#allocation3], 128
    $region21: #{tpu_custom_call.1} parent=1 // pred_fallthru
      _
    %125 = vsyncpa [#allocation3], 1

</llo_original>
